<compile_context>
chip_gen: v5e
topology: v5e:2x2
jax: 0.10.0
libtpu: 0.0.40
codegen_flags: <defaults>
</compile_context>

<pallas_src>
import jax
import jax.numpy as jnp
from jax.experimental import pallas as pl
from jax.experimental.pallas import tpu as pltpu


def _round_up(v, m):
    return ((v + m - 1) // m) * m


def _largest_tile(dim_padded, cap):
    """Largest multiple of 128 <= cap that divides dim_padded (dim_padded % 128 == 0)."""
    d = min(cap, dim_padded)
    d = (d // 128) * 128
    while d > 128:
        if dim_padded % d == 0:
            return d
        d -= 128
    return 128


def _linear_kernel(x_ref, w_ref, b_ref, o_ref, acc_ref):
    """One (tm, tn) output tile; K is the innermost (reduction) grid axis."""
    k = pl.program_id(2)

    @pl.when(k == 0)
    def _():
        acc_ref[...] = jnp.zeros_like(acc_ref)

    # x tile (tm, tk) @ w tile (tk, tn): plain nn-orientation matmul -- the
    # weight was transposed to [K, N] once at init, so no in-kernel transpose.
    acc_ref[...] += jnp.dot(
        x_ref[...], w_ref[...], preferred_element_type=jnp.float32
    )

    @pl.when(k == pl.num_programs(2) - 1)
    def _():
        o_ref[...] = (acc_ref[...] + b_ref[...].astype(jnp.float32)).astype(
            o_ref.dtype
        )


class DDPLinearAllreduceTPU:
    """Prepared-weight linear layer: y = x @ weight.T + bias.

    weight: [out_features, in_features]   bias: [out_features] (or None -> zeros)
    compute_dtype: optional (e.g. jnp.bfloat16) -- x/weight are cast in the
        wrapper so the kernel streams fewer HBM bytes; accumulation stays f32.
    out_dtype: optional output dtype (default: dtype of x at call time).
    """

    def __init__(self, weight, bias=None, *, compute_dtype=None, out_dtype=None):
        weight = jnp.asarray(weight)
        N, K = weight.shape
        if bias is None:
            bias = jnp.zeros((N,), dtype=weight.dtype)
        bias = jnp.asarray(bias)
        self.N, self.K = N, K
        self.compute_dtype = (
            jnp.dtype(compute_dtype)
            if compute_dtype is not None
            else jnp.dtype(weight.dtype)
        )
        self.out_dtype = jnp.dtype(out_dtype) if out_dtype is not None else None

        Np0 = _round_up(N, 128)
        Kp0 = _round_up(K, 128)

        # tn: lane-dense (>=128), <=512; keep >=2 N blocks when N >= 256 so the
        # v7x second TensorCore still has a parallel grid axis when M collapses
        # to a single block (small-M / decode shapes).
        tn_cap = min(512, Np0)
        if Np0 >= 256:
            tn_cap = min(tn_cap, max(128, (Np0 // 2) // 128 * 128))
        tn = _largest_tile(Np0, tn_cap)

        # tk: big K tiles so accumulator RMW and grid-step overhead amortize;
        # chosen to divide padded K exactly (no extra K padding of the weight).
        tk_cap = 2048 if self.compute_dtype.itemsize <= 2 else 1024
        tk = _largest_tile(Kp0, tk_cap)

        Np, Kp = Np0, Kp0
        self.tn, self.tk, self.Np, self.Kp = tn, tk, Np, Kp

        # One-time weight prep (off the per-call hot path): transpose to
        # [K, N], zero-pad (exact), optionally cast (halves streamed bytes).
        w_kn = weight.T
        if (Kp, Np) != (K, N):
            w_kn = jnp.pad(w_kn, ((0, Kp - K), (0, Np - N)))
        self.w_kn = w_kn.astype(self.compute_dtype)

        b2d = bias.reshape(1, N)
        if Np != N:
            b2d = jnp.pad(b2d, ((0, 0), (0, Np - N)))
        self.b2d = b2d  # original dtype; added in f32 inside the kernel

    def __call__(self, x):
        *lead, K = x.shape
        assert K == self.K, "in_features mismatch"
        M = 1
        for d in lead:
            M *= d

        N, Np, Kp, tn, tk = self.N, self.Np, self.Kp, self.tn, self.tk
        cdt = self.compute_dtype
        out_dtype = self.out_dtype if self.out_dtype is not None else x.dtype

        # tm: single block for small M, up to 512 rows for large M.
        Mp0 = _round_up(max(M, 1), 8)
        tm = Mp0 if Mp0 <= 512 else 512
        Mp = _round_up(M, tm)

        x2d = x.reshape(M, K)
        if x2d.dtype != cdt:
            x2d = x2d.astype(cdt)  # cast before pallas_call -> fewer HBM bytes
        if (Mp, Kp) != (M, K):
            x2d = jnp.pad(x2d, ((0, Mp - M), (0, Kp - K)))

        grid = (Mp // tm, Np // tn, Kp // tk)
        n_i, n_j = grid[0], grid[1]

        xsz = jnp.dtype(cdt).itemsize
        wsz = jnp.dtype(self.w_kn.dtype).itemsize
        osz = jnp.dtype(out_dtype).itemsize
        bsz = jnp.dtype(self.b2d.dtype).itemsize
        cost = pl.CostEstimate(
            flops=2 * Mp * Np * Kp,
            transcendentals=0,
            bytes_accessed=(
                Mp * Kp * xsz * n_j      # x re-read once per N block
                + Kp * Np * wsz * n_i    # weight re-read once per M block
                + Np * bsz * n_i
                + Mp * Np * osz
            ),
        )

        # Double-buffered x/w/out tiles + f32 accumulator + bias, plus margin.
        working_set = (
            2 * (tm * tk * xsz + tk * tn * wsz + tm * tn * osz)
            + tm * tn * 4
            + 2 * tn * bsz
        )
        vmem_limit = min(max(32 << 20, working_set + (8 << 20)), 48 << 20)

        out2d = pl.pallas_call(
            _linear_kernel,
            out_shape=jax.ShapeDtypeStruct((Mp, Np), out_dtype),
            grid_spec=pltpu.PrefetchScalarGridSpec(
                num_scalar_prefetch=0,
                grid=grid,
                in_specs=[
                    pl.BlockSpec((tm, tk), lambda i, j, k: (i, k)),  # x tile
                    pl.BlockSpec((tk, tn), lambda i, j, k: (k, j)),  # weight [K,N] tile
                    pl.BlockSpec((1, tn), lambda i, j, k: (0, j)),   # bias tile
                ],
                out_specs=pl.BlockSpec((tm, tn), lambda i, j, k: (i, j)),
                scratch_shapes=[pltpu.VMEM((tm, tn), jnp.float32)],
            ),
            compiler_params=pltpu.CompilerParams(
                dimension_semantics=("parallel", "parallel", "arbitrary"),
                vmem_limit_bytes=int(vmem_limit),
            ),
            cost_estimate=cost,
        )(x2d, self.w_kn, self.b2d)

        if (Mp, Np) != (M, N):
            out2d = out2d[:M, :N]

        # TODO(synk): dist.inference_all_reduce is a no-op (mp_group is None,
        # single device); multi-device would use pltpu.make_async_remote_copy.
        # TODO(synk): quantizer_{x,w,b,y}.update_param calibration statistics do
        # not affect the forward output and are not reproduced here.
        return out2d.reshape(*lead, N)


def ddp_linear_allreduce_forward(x, weight, bias=None, **kwargs):
    """One-shot convenience wrapper (prefers DDPLinearAllreduceTPU for reuse)."""
    return DDPLinearAllreduceTPU(weight, bias, **kwargs)(x)


if __name__ == "__main__":
    key = jax.random.PRNGKey(0)
    k_x, k_w, k_b, k_x2 = jax.random.split(key, 4)

    batch, seq, in_features, out_features = 2, 8, 128, 256
    x = jax.random.normal(k_x, (batch, seq, in_features), dtype=jnp.float32)
    weight = (
        jax.random.normal(k_w, (out_features, in_features), dtype=jnp.float32) * 0.02
    )
    bias = jax.random.normal(k_b, (out_features,), dtype=jnp.float32) * 0.1

    layer = DDPLinearAllreduceTPU(weight, bias)
    y = jax.block_until_ready(layer(x))
    y_ref = jnp.matmul(x, weight.T) + bias
    assert y.shape == (batch, seq, out_features)
    assert jnp.allclose(y, y_ref, atol=1e-4, rtol=1e-4)

    # Non-tile-aligned M (only the cheap x / M-side padding path per call).
    x2 = jax.random.normal(k_x2, (3, 5, in_features), dtype=jnp.float32)
    y2 = jax.block_until_ready(layer(x2))
    assert jnp.allclose(y2, jnp.matmul(x2, weight.T) + bias, atol=1e-4, rtol=1e-4)

    # Non-128-aligned K and N (one-time weight pad at init, not per call).
    in2, out2 = 96, 200
    w2 = jax.random.normal(k_w, (out2, in2), dtype=jnp.float32) * 0.02
    b2 = jax.random.normal(k_b, (out2,), dtype=jnp.float32) * 0.1
    x3 = jax.random.normal(k_x, (2, 7, in2), dtype=jnp.float32)
    layer2 = DDPLinearAllreduceTPU(w2, b2)
    y3 = jax.block_until_ready(layer2(x3))
    assert jnp.allclose(y3, jnp.matmul(x3, w2.T) + b2, atol=1e-4, rtol=1e-4)

    # bf16 streaming path (x/weight cast in the wrapper, f32 accumulation);
    # looser tolerance since inputs are rounded to bf16.
    layer_bf16 = DDPLinearAllreduceTPU(weight, bias, compute_dtype=jnp.bfloat16)
    y4 = jax.block_until_ready(layer_bf16(x))
    assert jnp.allclose(y4, y_ref, atol=5e-2, rtol=5e-2)

    print("KERNEL_OK")
</pallas_src>

<mosaic_0001>
module attributes {stable_mosaic.version = 11 : i64} {
  func.func @_linear_kernel(%arg0: i32, %arg1: i32, %arg2: i32, %arg3: memref<16x128xf32, #tpu.memory_space<vmem>>, %arg4: memref<128x128xf32, #tpu.memory_space<vmem>>, %arg5: memref<1x128xf32, #tpu.memory_space<vmem>>, %arg6: memref<16x128xf32, #tpu.memory_space<vmem>>, %arg7: memref<16x128xf32, #tpu.memory_space<vmem>>) attributes {dimension_semantics = [#tpu.dimension_semantics<parallel>, #tpu.dimension_semantics<parallel>, #tpu.dimension_semantics<arbitrary>], iteration_bounds = array<i64: 1, 2, 1>, scalar_prefetch = 0 : i64, scratch_operands = 1 : i64, tpu.core_type = #tpu.core_type<tc>, window_params = [{transform_indices = @transform_0, window_bounds = array<i64: 16, 128>}, {transform_indices = @transform_1, window_bounds = array<i64: 128, 128>}, {transform_indices = @transform_2, window_bounds = array<i64: 1, 128>}, {transform_indices = @transform_3, window_bounds = array<i64: 16, 128>}]} {
    %c0_i32 = arith.constant 0 : i32
    %0 = arith.cmpi eq, %arg2, %c0_i32 : i32
    %1 = arith.extui %0 : i1 to i32
    %c0_i32_0 = arith.constant 0 : i32
    %2 = arith.cmpi ne, %1, %c0_i32_0 : i32
    scf.if %2 {
      %cst_10 = arith.constant 0.000000e+00 : f32
      %12 = vector.broadcast %cst_10 : f32 to vector<16x128xf32>
      %c0_11 = arith.constant 0 : index
      %c0_12 = arith.constant 0 : index
      %13 = vector.load %arg7[%c0_11, %c0_12] : memref<16x128xf32, #tpu.memory_space<vmem>>, vector<16x128xf32>
      tpu.vector_store %arg7[%c0_11, %c0_12], %12 {strides = array<i32>} : memref<16x128xf32, #tpu.memory_space<vmem>>, vector<16x128xf32>,
    } else {
    }
    %c0 = arith.constant 0 : index
    %c0_1 = arith.constant 0 : index
    %3 = vector.load %arg7[%c0, %c0_1] : memref<16x128xf32, #tpu.memory_space<vmem>>, vector<16x128xf32>
    %c0_2 = arith.constant 0 : index
    %c0_3 = arith.constant 0 : index
    %4 = vector.load %arg3[%c0_2, %c0_3] : memref<16x128xf32, #tpu.memory_space<vmem>>, vector<16x128xf32>
    %c0_4 = arith.constant 0 : index
    %c0_5 = arith.constant 0 : index
    %5 = vector.load %arg4[%c0_4, %c0_5] : memref<128x128xf32, #tpu.memory_space<vmem>>, vector<128x128xf32>
    %cst = arith.constant dense<0.000000e+00> : vector<16x128xf32>
    %6 = tpu.matmul %4, %5, %cst {dimension_numbers = #tpu.dot_dimension_numbers<[1], [0], [0], [1], [0, 0, 1, 1], [], []>} : vector<16x128xf32>, vector<128x128xf32>, vector<16x128xf32> -> vector<16x128xf32>
    %7 = arith.addf %3, %6 : vector<16x128xf32>
    %c0_6 = arith.constant 0 : index
    %c0_7 = arith.constant 0 : index
    %8 = vector.load %arg7[%c0_6, %c0_7] : memref<16x128xf32, #tpu.memory_space<vmem>>, vector<16x128xf32>
    tpu.vector_store %arg7[%c0_6, %c0_7], %7 {strides = array<i32>} : memref<16x128xf32, #tpu.memory_space<vmem>>, vector<16x128xf32>,
    %c0_i32_8 = arith.constant 0 : i32
    %9 = arith.cmpi eq, %arg2, %c0_i32_8 : i32
    %10 = arith.extui %9 : i1 to i32
    %c0_i32_9 = arith.constant 0 : i32
    %11 = arith.cmpi ne, %10, %c0_i32_9 : i32
    scf.if %11 {
      %c0_10 = arith.constant 0 : index
      %c0_11 = arith.constant 0 : index
      %12 = vector.load %arg7[%c0_10, %c0_11] : memref<16x128xf32, #tpu.memory_space<vmem>>, vector<16x128xf32>
      %c0_12 = arith.constant 0 : index
      %c0_13 = arith.constant 0 : index
      %13 = vector.load %arg5[%c0_12, %c0_13] : memref<1x128xf32, #tpu.memory_space<vmem>>, vector<1x128xf32>
      %14 = vector.broadcast %13 : vector<1x128xf32> to vector<16x128xf32>
      %15 = arith.addf %12, %14 : vector<16x128xf32>
      %c0_14 = arith.constant 0 : index
      %c0_15 = arith.constant 0 : index
      %16 = vector.load %arg6[%c0_14, %c0_15] : memref<16x128xf32, #tpu.memory_space<vmem>>, vector<16x128xf32>
      tpu.vector_store %arg6[%c0_14, %c0_15], %15 {strides = array<i32>} : memref<16x128xf32, #tpu.memory_space<vmem>>, vector<16x128xf32>,
    } else {
    }
    return
  }
  func.func @transform_0(%arg0: i32, %arg1: i32, %arg2: i32) -> (i32, i32) {
    %c0_i32 = arith.constant 0 : i32
    return %arg0, %arg2 : i32, i32
  }
  func.func @transform_1(%arg0: i32, %arg1: i32, %arg2: i32) -> (i32, i32) {
    %c0_i32 = arith.constant 0 : i32
    return %arg2, %arg1 : i32, i32
  }
  func.func @transform_2(%arg0: i32, %arg1: i32, %arg2: i32) -> (i32, i32) {
    %c0_i32 = arith.constant 0 : i32
    %c0_i32_0 = arith.constant 0 : i32
    return %c0_i32, %arg1 : i32, i32
  }
  func.func @transform_3(%arg0: i32, %arg1: i32, %arg2: i32) -> (i32, i32) {
    %c0_i32 = arith.constant 0 : i32
    return %arg0, %arg1 : i32, i32
  }
}

</mosaic_0001>

<llo_original>
// kernel: tpu_custom_call.1
$region0: #{tpu_custom_call.1}
  #allocation0 [shape = 'u32[]', space=smem, size = 0x4, offset = 0x4, fixed_abs, tag = 'smem constant byte address 0x4 - core index']
  #allocation1 [shape = 'u32[72,128]{1,0:T(1,128)}', space=vmem, size = 0x9000, scoped, tag = 'internal scratch']
  #allocation2 [shape = 'f32[16,128]{1,0:T(8,128)}', space=vmem, size = 0x2000, scoped, tag = 'scratch operand']
  %s0 = inlined_call_operand.hbm [shape: f32[16,128], index: 0, kind: input, shape index: {}]
  %s1 = inlined_call_operand.hbm [shape: f32[128,256], index: 1, kind: input, shape index: {}]
  %s2 = inlined_call_operand.hbm [shape: f32[1,256], index: 2, kind: input, shape index: {}]
  %s3 = inlined_call_operand.hbm [shape: f32[16,256], index: 3, kind: output, shape index: {}]
  %s4 = sld [smem:[#allocation0]]
  $region65: #{tpu_custom_call.1} parent=0
    _
  %s6 = ssub.s32 1, %s4
  %s7 = scalar_select 0, %s6, %s4
  $region1: #{tpu_custom_call.1} parent=0
    #allocation3 [shape = 'u8[8192]{0}', space=vmem, size = 0x2000, scoped, tag = 'input window, operand 0, single buffered']
    #allocation4 [shape = 's32[2]{0}', space=sflag, size = 0x8, scoped, tag = 'scoped memory for tpu_custom_call.1']
    #allocation5 [shape = 's32[2]{0}', space=sflag, size = 0x8, scoped, tag = 'scoped memory for tpu_custom_call.1']
    #allocation6 [shape = 'u8[131072]{0}', space=vmem, size = 0x20000, scoped, tag = 'input window, operand 1']
    #allocation7 [shape = 's32[2]{0}', space=sflag, size = 0x8, scoped, tag = 'scoped memory for tpu_custom_call.1']
    #allocation8 [shape = 'u8[1024]{0}', space=vmem, size = 0x400, scoped, tag = 'input window, operand 2']
    #allocation9 [shape = 'u8[16384]{0}', space=vmem, size = 0x4000, scoped, tag = 'output window, operand 0']
    %8 = vsyncpa [#allocation4], 0
    %9 = vsyncpa [#allocation7], 0
    %s10 = scalar_lea.sflag [#allocation7], 1
    %11 = vsyncpa %s10, 0
    %12 = vsyncpa [#allocation5], 0
    %s13 = scalar_lea.sflag [#allocation5], 1
    %14 = vsyncpa %s13, 0
    loop: start=0, step=1, limit=4
    $region2: #{tpu_custom_call.1} parent=1 // loop_pre_header
      _
    $region3: #{tpu_custom_call.1} parent=1 // loop_header
      %s16 = sphi 0, %s20
      %p17 = scmp.ge.s32.totalorder %s16, 4
      %s23 = sphi 0, %s42
      %s24 = sphi 0, %s38
      %s25 = sphi 0, %s34
      %s26 = sphi 0, %s23
      %s27 = sphi 0, %s24
      %s28 = sphi 0, %s25
      %s29 = sphi 0, %s26
      %s30 = sphi 0, %s27
      %s31 = sphi 0, %s28
      %s47 = sphi 0, %s49
      %s50 = sphi 0, %s47
      %s51 = sphi 0, %s50
      %s67 = sphi 0, %s51
      %s75 = sphi 0, %s77
      %s78 = sphi 0, %s75
      %s79 = sphi 0, %s78
      %s95 = sphi 0, %s79
      %s101 = sphi 0, %s103
      %s104 = sphi 0, %s101
      %s105 = sphi 0, %s104
      %s121 = sphi 0, %s105
      %s129 = sphi 0, %s131
      %s132 = sphi 0, %s129
      %s133 = sphi 0, %s132
      %s149 = sphi 0, %s133
    $region4: #{tpu_custom_call.1} parent=1 // loop_header_branch
      %19 = sbr.rel (%p17) target = $region8
    $region5: #{tpu_custom_call.1} parent=1 // loop_body
      %s21 = ssub.s32 %s16, 1
      %s22 = ssub.s32 %s16, 2
      %s32 = sadd.s32 1, %s25
      %p33 = scmp.ge.s32.totalorder %s32, 1
      %s34 = scalar_select %p33, 0, %s32
      %s35 = sadd.s32 1, %s24
      %s36 = scalar_select %p33, %s35, %s24
      %p37 = scmp.ge.s32.totalorder %s36, 2
      %s38 = scalar_select %p37, 0, %s36
      %s39 = sadd.s32 1, %s23
      %s40 = scalar_select %p37, %s39, %s23
      %p41 = scmp.ge.s32.totalorder %s40, 1
      %s42 = scalar_select %p41, 0, %s40
      %s43 = ssub.s32 %s23, %s42
      %s44 = ssub.s32 %s25, %s34
      %s45 = sor.u32 %s43, %s44
      %p46 = scmp.eq.s32.totalorder %s45, 0
      %s48 = sadd.s32 %s47, 1
      %s49 = scalar_select %p46, %s47, %s48
      %p52 = pneg %p46
      %p53 = scmp.eq.s32.totalorder %s16, 1
      %p54 = por %p52, %p53
      %p55 = scmp.ne.s32.totalorder %s47, %s50
      %p56 = scmp.eq.s32.totalorder %s16, 0
      %p57 = por %p55, %p56
      %p58 = scmp.ne.s32.totalorder %s47, %s50
      %p59 = scmp.eq.s32.totalorder %s21, 1
      %p60 = por %p58, %p59
      %p61 = scmp.ne.s32.totalorder %s50, %s51
      %p62 = scmp.eq.s32.totalorder %s21, 0
      %p63 = por %p61, %p62
      %p64 = scmp.ne.s32.totalorder %s50, %s51
      %p65 = scmp.eq.s32.totalorder %s22, 1
      %p66 = por %p64, %p65
      %p68 = scmp.ne.s32.totalorder %s51, %s67
      %p69 = scmp.eq.s32.totalorder %s22, 0
      %p70 = por %p68, %p69
      %s71 = ssub.s32 %s25, %s34
      %s72 = ssub.s32 %s24, %s38
      %s73 = sor.u32 %s71, %s72
      %p74 = scmp.eq.s32.totalorder %s73, 0
      %s76 = sadd.s32 %s75, 1
      %s77 = scalar_select %p74, %s75, %s76
      %p80 = pneg %p74
      %p81 = scmp.eq.s32.totalorder %s16, 1
      %p82 = por %p80, %p81
      %p83 = scmp.ne.s32.totalorder %s75, %s78
      %p84 = scmp.eq.s32.totalorder %s16, 0
      %p85 = por %p83, %p84
      %p86 = scmp.ne.s32.totalorder %s75, %s78
      %p87 = scmp.eq.s32.totalorder %s21, 1
      %p88 = por %p86, %p87
      %p89 = scmp.ne.s32.totalorder %s78, %s79
      %p90 = scmp.eq.s32.totalorder %s21, 0
      %p91 = por %p89, %p90
      %p92 = scmp.ne.s32.totalorder %s78, %s79
      %p93 = scmp.eq.s32.totalorder %s22, 1
      %p94 = por %p92, %p93
      %p96 = scmp.ne.s32.totalorder %s79, %s95
      %p97 = scmp.eq.s32.totalorder %s22, 0
      %p98 = por %p96, %p97
      %s99 = ssub.s32 %s24, %s38
      %p100 = scmp.eq.s32.totalorder %s99, 0
      %s102 = sadd.s32 %s101, 1
      %s103 = scalar_select %p100, %s101, %s102
      %p106 = pneg %p100
      %p107 = scmp.eq.s32.totalorder %s16, 1
      %p108 = por %p106, %p107
      %p109 = scmp.ne.s32.totalorder %s101, %s104
      %p110 = scmp.eq.s32.totalorder %s16, 0
      %p111 = por %p109, %p110
      %p112 = scmp.ne.s32.totalorder %s101, %s104
      %p113 = scmp.eq.s32.totalorder %s21, 1
      %p114 = por %p112, %p113
      %p115 = scmp.ne.s32.totalorder %s104, %s105
      %p116 = scmp.eq.s32.totalorder %s21, 0
      %p117 = por %p115, %p116
      %p118 = scmp.ne.s32.totalorder %s104, %s105
      %p119 = scmp.eq.s32.totalorder %s22, 1
      %p120 = por %p118, %p119
      %p122 = scmp.ne.s32.totalorder %s105, %s121
      %p123 = scmp.eq.s32.totalorder %s22, 0
      %p124 = por %p122, %p123
      %s125 = ssub.s32 %s23, %s42
      %s126 = ssub.s32 %s24, %s38
      %s127 = sor.u32 %s125, %s126
      %p128 = scmp.eq.s32.totalorder %s127, 0
      %s130 = sadd.s32 %s129, 1
      %s131 = scalar_select %p128, %s129, %s130
      %p134 = pneg %p128
      %p135 = scmp.eq.s32.totalorder %s16, 1
      %p136 = por %p134, %p135
      %p137 = scmp.ne.s32.totalorder %s129, %s132
      %p138 = scmp.eq.s32.totalorder %s16, 0
      %p139 = por %p137, %p138
      %p140 = scmp.ne.s32.totalorder %s129, %s132
      %p141 = scmp.eq.s32.totalorder %s21, 1
      %p142 = por %p140, %p141
      %p143 = scmp.ne.s32.totalorder %s132, %s133
      %p144 = scmp.eq.s32.totalorder %s21, 0
      %p145 = por %p143, %p144
      %p146 = scmp.ne.s32.totalorder %s132, %s133
      %p147 = scmp.eq.s32.totalorder %s22, 1
      %p148 = por %p146, %p147
      %p150 = scmp.ne.s32.totalorder %s133, %s149
      %p151 = scmp.eq.s32.totalorder %s22, 0
      %p152 = por %p150, %p151
      %p153 = scmp.le.s32.totalorder 1, %s16
      %p154 = scmp.lt.s32.totalorder %s16, 3
      %p155 = pnand %p153, %p154
      %p156 = pneg %p155
      // Predicated region
      $region9: #{tpu_custom_call.1} parent=5 // pred_check
        _
      $region10: #{tpu_custom_call.1} parent=5 // pred_check_branch
        %158 = sbr.rel (%p155) target = $region12
      $region11: #{tpu_custom_call.1} parent=5 // pred_region
        %s159 = ssub.s32 %s16, 1
        // Predicated region
        $region13: #{tpu_custom_call.1} parent=11 // pred_check
          %p160 = pneg %p63
        $region14: #{tpu_custom_call.1} parent=11 // pred_check_branch
          %162 = sbr.rel (%p160) target = $region16
        $region15: #{tpu_custom_call.1} parent=11 // pred_region
          %s163 = smul.u32 2, %s26
          %165 = vsyncadd [#allocation4], 0
          %s166 = sadd.s32 %s28, %s163
          %s167 = smul.addr %s166, 8
          %s168 = scalar_lea.hbm %s0, %s167
          %s169 = sshll.u32 %s168, 4
          %s170 = int_to_ptr.hbm [resolvable:$true] %s169
          %s171 = sshll.u32 [#allocation3], 4
          %s172 = int_to_ptr.vmem [resolvable:$true] %s171
          %177 = dma.hbm_to_vmem [thread:$0]  %s170, 256, %s172, [#allocation4], 128, 128, 8
        $region16: #{tpu_custom_call.1} parent=11 // pred_fallthru
          _
      $region12: #{tpu_custom_call.1} parent=5 // pred_fallthru
        _
      %p178 = scmp.lt.s32.totalorder %s16, 2
      // Predicated region
      $region17: #{tpu_custom_call.1} parent=5 // pred_check
        %p179 = pneg %p178
      $region18: #{tpu_custom_call.1} parent=5 // pred_check_branch
        %181 = sbr.rel (%p179) target = $region20
      $region19: #{tpu_custom_call.1} parent=5 // pred_region
        // Predicated region
        $region21: #{tpu_custom_call.1} parent=19 // pred_check
          %p182 = pneg %p85
        $region22: #{tpu_custom_call.1} parent=19 // pred_check_branch
          %184 = sbr.rel (%p182) target = $region24
        $region23: #{tpu_custom_call.1} parent=19 // pred_region
          %s185 = sand.u32 %s16, 1
          %s186 = scalar_lea.sflag [#allocation7], %s185
          %s187 = sand.u32 %s75, 1
          %s188 = smul.addr %s187, 128
          %s189 = scalar_lea.vmem [#allocation6], %s188
          %s190 = smul.u32 16, %s25
          %192 = vsyncadd %s186, 0
          %s193 = smul.addr %s190, 2
          %s194 = sadd.s32 %s24, %s193
          %s195 = smul.addr %s194, 8
          %s196 = scalar_lea.hbm %s1, %s195
          %s197 = sshll.u32 %s196, 4
          %s198 = int_to_ptr.hbm [resolvable:$true] %s197
          %s199 = sshll.u32 %s189, 4
          %s200 = int_to_ptr.vmem [resolvable:$true] %s199
          %205 = dma.hbm_to_vmem [thread:$0]  %s198, 2048, %s200, %s186, 256, 128, 8
        $region24: #{tpu_custom_call.1} parent=19 // pred_fallthru
          _
        // Predicated region
        $region25: #{tpu_custom_call.1} parent=19 // pred_check
          %p206 = pneg %p111
        $region26: #{tpu_custom_call.1} parent=19 // pred_check_branch
          %208 = sbr.rel (%p206) target = $region28
        $region27: #{tpu_custom_call.1} parent=19 // pred_region
          %s209 = sand.u32 %s16, 1
          %s210 = scalar_lea.sflag [#allocation7], %s209
          %s211 = sand.u32 %s101, 1
          %s212 = scalar_lea.vmem [#allocation8], %s211
          %214 = vsyncadd %s210, 0
          %s215 = scalar_lea.hbm %s2, %s24
          %s217 = sshll.u32 %s215, 4
          %s218 = int_to_ptr.hbm [resolvable:$true] %s217
          %s219 = sshll.u32 %s212, 4
          %s220 = int_to_ptr.vmem [resolvable:$true] %s219
          %222 = dma.hbm_to_vmem [thread:$0]  %s218, 16, %s220, %s210
        $region28: #{tpu_custom_call.1} parent=19 // pred_fallthru
          _
      $region20: #{tpu_custom_call.1} parent=5 // pred_fallthru
        _
      %p223 = scmp.le.s32.totalorder 1, %s16
      %p224 = scmp.lt.s32.totalorder %s16, 3
      %p225 = pnand %p223, %p224
      %p226 = pneg %p225
      // Predicated region
      $region29: #{tpu_custom_call.1} parent=5 // pred_check
        _
      $region30: #{tpu_custom_call.1} parent=5 // pred_check_branch
        %228 = sbr.rel (%p225) target = $region32
      $region31: #{tpu_custom_call.1} parent=5 // pred_region
        %s229 = ssub.s32 %s16, 1
        // Predicated region
        $region33: #{tpu_custom_call.1} parent=31 // pred_check
          %p230 = pneg %p63
        $region34: #{tpu_custom_call.1} parent=31 // pred_check_branch
          %232 = sbr.rel (%p230) target = $region36
        $region35: #{tpu_custom_call.1} parent=31 // pred_region
          %234 = dma.done [#allocation4], 256
        $region36: #{tpu_custom_call.1} parent=31 // pred_fallthru
          _
        %s235 = sand.u32 %s21, 1
        %s236 = scalar_lea.sflag [#allocation7], %s235
        %s237 = sand.u32 %s78, 1
        %s238 = smul.addr %s237, 128
        %s239 = scalar_lea.vmem [#allocation6], %s238
        // Predicated region
        $region37: #{tpu_custom_call.1} parent=31 // pred_check
          %p240 = pneg %p91
        $region38: #{tpu_custom_call.1} parent=31 // pred_check_branch
          %242 = sbr.rel (%p240) target = $region40
        $region39: #{tpu_custom_call.1} parent=31 // pred_region
          %244 = dma.done %s236, 2048
        $region40: #{tpu_custom_call.1} parent=31 // pred_fallthru
          _
        %s245 = sand.u32 %s21, 1
        %s246 = scalar_lea.sflag [#allocation7], %s245
        %s247 = sand.u32 %s104, 1
        %s248 = scalar_lea.vmem [#allocation8], %s247
        // Predicated region
        $region41: #{tpu_custom_call.1} parent=31 // pred_check
          %p249 = pneg %p117
        $region42: #{tpu_custom_call.1} parent=31 // pred_check_branch
          %251 = sbr.rel (%p249) target = $region44
        $region43: #{tpu_custom_call.1} parent=31 // pred_region
          %253 = dma.done %s246, 16
        $region44: #{tpu_custom_call.1} parent=31 // pred_fallthru
          _
        %p254 = pneg %p63
        %p255 = pneg %p60
        %s256 = sand.u32 %s21, 1
        %s257 = scalar_lea.sflag [#allocation7], %s256
        %s258 = sand.u32 %s78, 1
        %s259 = smul.addr %s258, 128
        %s260 = scalar_lea.vmem [#allocation6], %s259
        %p261 = pneg %p91
        %p262 = pneg %p88
        %s263 = sand.u32 %s21, 1
        %s264 = scalar_lea.sflag [#allocation7], %s263
        %s265 = sand.u32 %s104, 1
        %s266 = scalar_lea.vmem [#allocation8], %s265
        %p267 = pneg %p117
        %p268 = pneg %p114
        %p269 = pneg %p145
        %p270 = pneg %p142
        %s271 = sand.u32 %s132, 1
        %s272 = scalar_lea.sflag [#allocation5], %s271
        %s273 = sand.u32 %s132, 1
        %s274 = smul.addr %s273, 16
        %s275 = scalar_lea.vmem [#allocation9], %s274
        %s276 = smul.u32 2, %s26
        %s277 = smul.u32 16, %s28
        %s278 = smul.u32 2, %s26
        %p279 = scmp.eq.s32.totalorder %s28, 0
        // Predicated region
        $region45: #{tpu_custom_call.1} parent=31 // pred_check
          %p280 = pneg %p279
        $region46: #{tpu_custom_call.1} parent=31 // pred_check_branch
          %282 = sbr.rel (%p280) target = $region48
        $region47: #{tpu_custom_call.1} parent=31 // pred_region
          %283 = vst [vmem:[#allocation2] sm:$0xff] 0.0
          %284 = vst [vmem:[#allocation2 + $0x8] sm:$0xff] 0.0
        $region48: #{tpu_custom_call.1} parent=31 // pred_fallthru
          _
        %v285 = vld [vmem:[#allocation2] sm:$0xff]
        %v286 = vld [vmem:[#allocation2 + $0x8] sm:$0xff]
        %v287 = vld [vmem:[#allocation3] sm:$0xff]
        %v288 = vld [vmem:[#allocation3 + $0x8] sm:$0xff]
        %v289 = vld [vmem:[%s239] sm:$0xff]
        %v290 = vld [vmem:[%s239 + $0x8] sm:$0xff]
        %v291 = vld [vmem:[%s239 + $0x10] sm:$0xff]
        %v292 = vld [vmem:[%s239 + $0x18] sm:$0xff]
        %v293 = vld [vmem:[%s239 + $0x20] sm:$0xff]
        %v294 = vld [vmem:[%s239 + $0x28] sm:$0xff]
        %v295 = vld [vmem:[%s239 + $0x30] sm:$0xff]
        %v296 = vld [vmem:[%s239 + $0x38] sm:$0xff]
        %v297 = vld [vmem:[%s239 + $0x40] sm:$0xff]
        %v298 = vld [vmem:[%s239 + $0x48] sm:$0xff]
        %v299 = vld [vmem:[%s239 + $0x50] sm:$0xff]
        %v300 = vld [vmem:[%s239 + $0x58] sm:$0xff]
        %v301 = vld [vmem:[%s239 + $0x60] sm:$0xff]
        %v302 = vld [vmem:[%s239 + $0x68] sm:$0xff]
        %v303 = vld [vmem:[%s239 + $0x70] sm:$0xff]
        %v304 = vld [vmem:[%s239 + $0x78] sm:$0xff]
        %305 = vmatpush.msra.mxu0 %v304
        %306 = vmatpush.msra.mxu0 %v303
        %307 = vmatpush.msra.mxu0 %v302
        %308 = vmatpush.msra.mxu0 %v301
        %309 = vmatpush.msra.mxu0 %v300
        %310 = vmatpush.msra.mxu0 %v299
        %311 = vmatpush.msra.mxu0 %v298
        %312 = vmatpush.msra.mxu0 %v297
        %313 = vmatpush.msra.mxu0 %v296
        %314 = vmatpush.msra.mxu0 %v295
        %315 = vmatpush.msra.mxu0 %v294
        %316 = vmatpush.msra.mxu0 %v293
        %317 = vmatpush.msra.mxu0 %v292
        %318 = vmatpush.msra.mxu0 %v291
        %319 = vmatpush.msra.mxu0 %v290
        %320 = vmatpush.msra.mxu0 %v289
        %321 = vmatmul.f32.gmra.mxu0 %v287
        %v322 = vpop.f32.mrf.mxu0
        %v323 = vadd.f32 0.0, %v322
        %324 = vmatmul.f32.gmra.mxu0 %v288
        %v325 = vpop.f32.mrf.mxu0
        %v326 = vadd.f32 0.0, %v325
        %327 = vdwg.mxu0
        %v328 = vadd.f32 %v285, %v323
        %v329 = vadd.f32 %v286, %v326
        %330 = vst [vmem:[#allocation2] sm:$0xff] %v328
        %331 = vst [vmem:[#allocation2 + $0x8] sm:$0xff] %v329
        // Predicated region
        $region49: #{tpu_custom_call.1} parent=31 // pred_check
          %p332 = pneg %p279
        $region50: #{tpu_custom_call.1} parent=31 // pred_check_branch
          %334 = sbr.rel (%p332) target = $region52
        $region51: #{tpu_custom_call.1} parent=31 // pred_region
          %v335 = vld [vmem:[#allocation2] sm:$0xff]
          %v336 = vld [vmem:[#allocation2 + $0x8] sm:$0xff]
          %v337 = vld [vmem:[%s248] sm:$0x1]
          %v339 = vperm.slane %v337, 0
          %v341 = vadd.f32 %v335, %v339
          %v342 = vadd.f32 %v336, %v339
          %343 = vst [vmem:[%s275] sm:$0xff] %v341
          %344 = vst [vmem:[%s275 + $0x8] sm:$0xff] %v342
        $region52: #{tpu_custom_call.1} parent=31 // pred_fallthru
          _
        %s345 = sand.u32 %s132, 1
        %s346 = scalar_lea.sflag [#allocation5], %s345
        %s347 = sand.u32 %s132, 1
        %s348 = smul.addr %s347, 16
        %s349 = scalar_lea.vmem [#allocation9], %s348
        // Predicated region
        $region53: #{tpu_custom_call.1} parent=31 // pred_check
          %p350 = pneg %p142
        $region54: #{tpu_custom_call.1} parent=31 // pred_check_branch
          %352 = sbr.rel (%p350) target = $region56
        $region55: #{tpu_custom_call.1} parent=31 // pred_region
          %s353 = smul.u32 2, %s26
          %355 = vsyncadd %s346, 0
          %s356 = smul.addr %s353, 2
          %s357 = sadd.s32 %s27, %s356
          %s358 = smul.addr %s357, 8
          %s359 = scalar_lea.hbm %s3, %s358
          %s360 = sshll.u32 %s349, 4
          %s361 = int_to_ptr.vmem [resolvable:$true] %s360
          %s362 = sshll.u32 %s359, 4
          %s363 = int_to_ptr.hbm [resolvable:$true] %s362
          %368 = dma.vmem_to_hbm [thread:$0]  %s361, 256, %s363, %s346, 128, 256, 8
        $region56: #{tpu_custom_call.1} parent=31 // pred_fallthru
          _
      $region32: #{tpu_custom_call.1} parent=5 // pred_fallthru
        _
      %p369 = scmp.le.s32.totalorder 2, %s16
      // Predicated region
      $region57: #{tpu_custom_call.1} parent=5 // pred_check
        %p370 = pneg %p369
      $region58: #{tpu_custom_call.1} parent=5 // pred_check_branch
        %372 = sbr.rel (%p370) target = $region60
      $region59: #{tpu_custom_call.1} parent=5 // pred_region
        %s373 = ssub.s32 %s16, 2
        // Predicated region
        $region61: #{tpu_custom_call.1} parent=59 // pred_check
          %p374 = pneg %p148
        $region62: #{tpu_custom_call.1} parent=59 // pred_check_branch
          %376 = sbr.rel (%p374) target = $region64
        $region63: #{tpu_custom_call.1} parent=59 // pred_region
          %s377 = sand.u32 %s133, 1
          %s378 = scalar_lea.sflag [#allocation5], %s377
          %s379 = sand.u32 %s133, 1
          %s380 = smul.addr %s379, 16
          %s381 = scalar_lea.vmem [#allocation9], %s380
          %383 = dma.done %s378, 256
        $region64: #{tpu_custom_call.1} parent=59 // pred_fallthru
          _
      $region60: #{tpu_custom_call.1} parent=5 // pred_fallthru
        _
    $region6: #{tpu_custom_call.1} parent=1 // loop_footer
      %s20 = sadd.s32 1, %s16
    $region7: #{tpu_custom_call.1} parent=1 // loop_footer_branch
      %15 = sbr.rel target = $region3
    $region8: #{tpu_custom_call.1} parent=1 // loop_exit
      _
    %384 = vsyncpa [#allocation4], 1
    %s385 = scalar_lea.sflag [#allocation4], 1
    %386 = vsyncpa %s385, 1
    %387 = vsyncpa [#allocation7], 1
    %s388 = scalar_lea.sflag [#allocation7], 1
    %389 = vsyncpa %s388, 1
    %390 = vsyncpa [#allocation5], 1
    %s391 = scalar_lea.sflag [#allocation5], 1
    %392 = vsyncpa %s391, 1

</llo_original>
